<compile_context>
chip_gen: v7x
topology: tpu7x:2x2x1
jax: 0.10.0
libtpu: 0.0.40
codegen_flags: <defaults>
</compile_context>

<pallas_src>
import functools

import jax
import jax.numpy as jnp
from jax.experimental import pallas as pl
from jax.experimental.pallas import tpu as pltpu


def _round_up(v, m):
    return (v + m - 1) // m * m


def _vmem_cap_bytes():
    """Per-generation scoped-VMEM cap with headroom for Mosaic scratch."""
    try:
        phys = pltpu.get_tpu_info().vmem_capacity_bytes
    except Exception:
        phys = 128 << 20
    if phys <= (64 << 20):          # v7x-class: 64 MiB physical per TensorCore
        return 52 << 20
    return 100 << 20                # v5e / v6e: 128 MiB physical


def _weight_spec(shape, index_map, buffers=None):
    """BlockSpec for a streamed weight tile; deeper buffering when supported."""
    if buffers is not None:
        try:
            return pl.BlockSpec(shape, index_map, pipeline_mode=pl.Buffered(buffers))
        except (TypeError, AttributeError):
            pass
    return pl.BlockSpec(shape, index_map)


# ---------------------------------------------------------------------------
# Kernel bodies.  Weights arrive pre-transposed (MXU-native K-contraction):
#   w1t: (d_model, d_ff_tile)   w2t: (d_ff_tile, d_model)
# ---------------------------------------------------------------------------
def _ffn_kernel_resident(x_ref, w1_ref, b1_ref, w2_ref, b2_ref, o_ref):
    # Whole d_ff resident in VMEM: single pass, no accumulator scratch.
    h = jnp.dot(x_ref[...], w1_ref[...], preferred_element_type=jnp.float32)
    h = jnp.maximum(h + b1_ref[...], 0.0)          # bias + ReLU in f32 (VPU)
    # dropout: eval-mode identity (see TODO at top).
    out = jnp.dot(h.astype(w2_ref.dtype), w2_ref[...],
                  preferred_element_type=jnp.float32)
    o_ref[...] = (out + b2_ref[...]).astype(o_ref.dtype)


def _ffn_kernel_tiled(x_ref, w1_ref, b1_ref, w2_ref, b2_ref, o_ref, acc_ref):
    # d_ff streamed in tiles along the last ("arbitrary") grid axis.
    k = pl.program_id(1)

    h = jnp.dot(x_ref[...], w1_ref[...], preferred_element_type=jnp.float32)
    h = jnp.maximum(h + b1_ref[...], 0.0)
    # dropout: eval-mode identity (see TODO at top).
    part = jnp.dot(h.astype(w2_ref.dtype), w2_ref[...],
                   preferred_element_type=jnp.float32)

    @pl.when(k == 0)
    def _():                        # init with first partial product (no memset)
        acc_ref[...] = part

    @pl.when(k > 0)
    def _():
        acc_ref[...] += part

    @pl.when(k == pl.num_programs(1) - 1)
    def _():
        o_ref[...] = (acc_ref[...] + b2_ref[...]).astype(o_ref.dtype)


# ---------------------------------------------------------------------------
# Wrapper.
# ---------------------------------------------------------------------------
@functools.partial(
    jax.jit,
    static_argnames=("tile_n", "tile_f", "compute_dtype", "weights_resident"))
def positionwise_ffn(x, w1, b1, w2, b2, *, tile_n=512, tile_f=512,
                     compute_dtype=jnp.bfloat16, weights_resident=None):
    """x: (batch, seq, d_model).  PyTorch nn.Linear conventions:
    w1: (d_ff, d_model), b1: (d_ff,), w2: (d_model, d_ff), b2: (d_model,).

    bf16 compute_dtype (f32 accumulation) is recommended on all TPU
    generations, including v5e.  Ideally weights are stored pre-cast (and
    pre-transposed) at parameter-load time; the casts/transposes below are
    then trivial.  weights_resident=None auto-selects the VMEM-resident
    weight path when both weight matrices fit the generation's VMEM budget.
    """
    batch, seq, d_model = x.shape
    d_ff = w1.shape[0]
    n = batch * seq

    csize = jnp.dtype(compute_dtype).itemsize
    osize = jnp.dtype(x.dtype).itemsize
    cap = _vmem_cap_bytes()

    # ---- token tile: 256-aligned (v6e/v7x MXU is 2x256^2), padded ----
    tile = min(_round_up(max(tile_n, 256), 256), _round_up(n, 256))
    n_pad = _round_up(n, tile)

    # ---- d_ff tiling / residency decision ----
    d_ff_256 = _round_up(d_ff, 256)
    resident_bytes = (
        2 * tile * d_model * (csize + osize)       # x + out, double-buffered
        + 2 * 2 * d_model * d_ff_256 * csize       # w1t + w2t buffers
        + 2 * 2 * (d_ff_256 + d_model) * 4         # biases
        + tile * d_ff_256 * (4 + csize)            # h (f32) + cast copy
        + tile * d_model * 4                       # f32 matmul result
    )
    if weights_resident is None:
        resident = resident_bytes + (8 << 20) <= cap
    else:
        resident = bool(weights_resident)

    if resident:
        d_ff_pad = d_ff_256
        tf = d_ff_pad
        vmem_needed = resident_bytes
    else:
        tf = min(_round_up(max(tile_f, 256), 256), d_ff_256)
        d_ff_pad = _round_up(d_ff, tf)
        vmem_needed = (
            2 * tile * d_model * (csize + osize)   # x + out, double-buffered
            + 3 * 2 * d_model * tf * csize         # w1t + w2t, Buffered(3)
            + 2 * 2 * (tf + d_model) * 4           # biases
            + tile * tf * (4 + csize)              # h (f32) + cast copy
            + 2 * tile * d_model * 4               # acc scratch + partial
        )
    vmem_limit = int(max(min(vmem_needed + (8 << 20), cap), 16 << 20))

    # ---- operand prep: cast once, pad d_ff, transpose to MXU-native layout ----
    x2 = x.reshape(n, d_model).astype(compute_dtype)
    if n_pad != n:
        x2 = jnp.pad(x2, ((0, n_pad - n), (0, 0)))
    w1c = w1.astype(compute_dtype)
    w2c = w2.astype(compute_dtype)
    b1r = b1.astype(jnp.float32).reshape(1, d_ff)
    b2r = b2.astype(jnp.float32).reshape(1, d_model)
    if d_ff_pad != d_ff:
        # Zero-padded d_ff columns contribute relu(0 + 0) @ 0 = 0 -> exact.
        w1c = jnp.pad(w1c, ((0, d_ff_pad - d_ff), (0, 0)))
        w2c = jnp.pad(w2c, ((0, 0), (0, d_ff_pad - d_ff)))
        b1r = jnp.pad(b1r, ((0, 0), (0, d_ff_pad - d_ff)))
    w1t = w1c.T   # (d_model, d_ff_pad)   one-time prep cost
    w2t = w2c.T   # (d_ff_pad, d_model)

    if resident:
        grid = (n_pad // tile,)
        in_specs = [
            pl.BlockSpec((tile, d_model), lambda i: (i, 0)),
            pl.BlockSpec((d_model, d_ff_pad), lambda i: (0, 0)),
            pl.BlockSpec((1, d_ff_pad), lambda i: (0, 0)),
            pl.BlockSpec((d_ff_pad, d_model), lambda i: (0, 0)),
            pl.BlockSpec((1, d_model), lambda i: (0, 0)),
        ]
        out_specs = pl.BlockSpec((tile, d_model), lambda i: (i, 0))
        scratch_shapes = []
        kernel = _ffn_kernel_resident
        dim_sem = ("parallel",)
    else:
        grid = (n_pad // tile, d_ff_pad // tf)      # reduction axis last
        in_specs = [
            pl.BlockSpec((tile, d_model), lambda i, k: (i, 0)),
            _weight_spec((d_model, tf), lambda i, k: (0, k), buffers=3),
            pl.BlockSpec((1, tf), lambda i, k: (0, k)),
            _weight_spec((tf, d_model), lambda i, k: (k, 0), buffers=3),
            pl.BlockSpec((1, d_model), lambda i, k: (0, 0)),
        ]
        out_specs = pl.BlockSpec((tile, d_model), lambda i, k: (i, 0))
        scratch_shapes = [pltpu.VMEM((tile, d_model), jnp.float32)]
        kernel = _ffn_kernel_tiled
        dim_sem = ("parallel", "arbitrary")

    out = pl.pallas_call(
        kernel,
        out_shape=jax.ShapeDtypeStruct((n_pad, d_model), x.dtype),
        grid_spec=pltpu.PrefetchScalarGridSpec(
            num_scalar_prefetch=0,
            grid=grid,
            in_specs=in_specs,
            out_specs=out_specs,
            scratch_shapes=scratch_shapes,
        ),
        compiler_params=pltpu.CompilerParams(
            dimension_semantics=dim_sem,
            vmem_limit_bytes=vmem_limit,
        ),
    )(x2, w1t, b1r, w2t, b2r)

    return out[:n].reshape(batch, seq, d_model)


def _ref_ffn(x, w1, b1, w2, b2):
    h = jnp.maximum(jnp.einsum("bsd,fd->bsf", x, w1) + b1, 0.0)
    return jnp.einsum("bsf,df->bsd", h, w2) + b2


if __name__ == "__main__":
    # Small but lane-dense shapes (last dims are multiples of 128).
    batch, seq, d_model, d_ff = 2, 8, 128, 256

    key = jax.random.PRNGKey(0)
    kx, k1, k2, k3, k4 = jax.random.split(key, 5)

    x = jax.random.normal(kx, (batch, seq, d_model), dtype=jnp.float32)

    # Deterministic parameter init (uniform, PyTorch-Linear-like bounds).
    bound1 = 1.0 / (d_model ** 0.5)
    bound2 = 1.0 / (d_ff ** 0.5)
    w1 = jax.random.uniform(k1, (d_ff, d_model), jnp.float32, -bound1, bound1)
    b1 = jax.random.uniform(k2, (d_ff,), jnp.float32, -bound1, bound1)
    w2 = jax.random.uniform(k3, (d_model, d_ff), jnp.float32, -bound2, bound2)
    b2 = jax.random.uniform(k4, (d_model,), jnp.float32, -bound2, bound2)

    y_ref = _ref_ffn(x, w1, b1, w2, b2)

    # 1) Resident-weight path, full f32: exact check vs reference.
    y_f32 = positionwise_ffn(x, w1, b1, w2, b2, compute_dtype=jnp.float32)
    jax.block_until_ready(y_f32)
    assert y_f32.shape == (batch, seq, d_model)
    assert jnp.allclose(y_f32, y_ref, atol=1e-5, rtol=1e-5), "f32 mismatch vs reference"

    # 2) Resident-weight path, bf16 MXU inputs / f32 accumulation (recommended
    #    on all generations).  Weights pre-cast once, as at parameter-load time.
    w1_bf, w2_bf = w1.astype(jnp.bfloat16), w2.astype(jnp.bfloat16)
    y_bf = positionwise_ffn(x, w1_bf, b1, w2_bf, b2, compute_dtype=jnp.bfloat16)
    jax.block_until_ready(y_bf)
    assert y_bf.shape == (batch, seq, d_model)
    assert jnp.allclose(y_bf, y_ref, atol=3e-2, rtol=3e-2), "bf16 mismatch vs reference"

    # 3) Forced k-tiled (streamed-weight) fallback path with a 2-step d_ff
    #    reduction, to exercise the f32 accumulator kernel.
    d_ff2 = 512
    k5, k6, k7 = jax.random.split(k4, 3)
    bound2b = 1.0 / (d_ff2 ** 0.5)
    w1b = jax.random.uniform(k5, (d_ff2, d_model), jnp.float32, -bound1, bound1)
    b1b = jax.random.uniform(k6, (d_ff2,), jnp.float32, -bound1, bound1)
    w2b = jax.random.uniform(k7, (d_model, d_ff2), jnp.float32, -bound2b, bound2b)
    y_tiled = positionwise_ffn(x, w1b, b1b, w2b, b2, compute_dtype=jnp.float32,
                               weights_resident=False, tile_f=256)
    jax.block_until_ready(y_tiled)
    y_tiled_ref = _ref_ffn(x, w1b, b1b, w2b, b2)
    assert y_tiled.shape == (batch, seq, d_model)
    assert jnp.allclose(y_tiled, y_tiled_ref, atol=1e-4, rtol=1e-4), \
        "tiled-path mismatch vs reference"

    print("KERNEL_OK")
</pallas_src>

<mosaic_0001>
module attributes {stable_mosaic.version = 11 : i64} {
  func.func @_ffn_kernel_resident(%arg0: i32, %arg1: memref<256x128xf32, #tpu.memory_space<vmem>>, %arg2: memref<128x256xf32, #tpu.memory_space<vmem>>, %arg3: memref<1x256xf32, #tpu.memory_space<vmem>>, %arg4: memref<256x128xf32, #tpu.memory_space<vmem>>, %arg5: memref<1x128xf32, #tpu.memory_space<vmem>>, %arg6: memref<256x128xf32, #tpu.memory_space<vmem>>) attributes {dimension_semantics = [#tpu.dimension_semantics<parallel>], iteration_bounds = array<i64: 1>, scalar_prefetch = 0 : i64, scratch_operands = 0 : i64, tpu.core_type = #tpu.core_type<tc>, window_params = [{transform_indices = @transform_0, window_bounds = array<i64: 256, 128>}, {pipeline_mode = #tpu.pipeline_mode<synchronous>, transform_indices = @transform_1, window_bounds = array<i64: 128, 256>}, {pipeline_mode = #tpu.pipeline_mode<synchronous>, transform_indices = @transform_2, window_bounds = array<i64: 1, 256>}, {pipeline_mode = #tpu.pipeline_mode<synchronous>, transform_indices = @transform_3, window_bounds = array<i64: 256, 128>}, {pipeline_mode = #tpu.pipeline_mode<synchronous>, transform_indices = @transform_4, window_bounds = array<i64: 1, 128>}, {transform_indices = @transform_5, window_bounds = array<i64: 256, 128>}]} {
    %c0 = arith.constant 0 : index
    %c0_0 = arith.constant 0 : index
    %0 = vector.load %arg1[%c0, %c0_0] : memref<256x128xf32, #tpu.memory_space<vmem>>, vector<256x128xf32>
    %c0_1 = arith.constant 0 : index
    %c0_2 = arith.constant 0 : index
    %1 = vector.load %arg2[%c0_1, %c0_2] : memref<128x256xf32, #tpu.memory_space<vmem>>, vector<128x256xf32>
    %cst = arith.constant dense<0.000000e+00> : vector<256x256xf32>
    %2 = tpu.matmul %0, %1, %cst {dimension_numbers = #tpu.dot_dimension_numbers<[1], [0], [0], [1], [0, 0, 1, 1], [], []>} : vector<256x128xf32>, vector<128x256xf32>, vector<256x256xf32> -> vector<256x256xf32>
    %c0_3 = arith.constant 0 : index
    %c0_4 = arith.constant 0 : index
    %3 = vector.load %arg3[%c0_3, %c0_4] : memref<1x256xf32, #tpu.memory_space<vmem>>, vector<1x256xf32>
    %4 = vector.broadcast %3 : vector<1x256xf32> to vector<256x256xf32>
    %5 = arith.addf %2, %4 : vector<256x256xf32>
    %cst_5 = arith.constant 0.000000e+00 : f32
    %6 = vector.broadcast %cst_5 : f32 to vector<256x256xf32>
    %7 = arith.maximumf %5, %6 : vector<256x256xf32>
    %c0_6 = arith.constant 0 : index
    %c0_7 = arith.constant 0 : index
    %8 = vector.load %arg4[%c0_6, %c0_7] : memref<256x128xf32, #tpu.memory_space<vmem>>, vector<256x128xf32>
    %cst_8 = arith.constant dense<0.000000e+00> : vector<256x128xf32>
    %9 = tpu.matmul %7, %8, %cst_8 {dimension_numbers = #tpu.dot_dimension_numbers<[1], [0], [0], [1], [0, 0, 1, 1], [], []>} : vector<256x256xf32>, vector<256x128xf32>, vector<256x128xf32> -> vector<256x128xf32>
    %c0_9 = arith.constant 0 : index
    %c0_10 = arith.constant 0 : index
    %10 = vector.load %arg5[%c0_9, %c0_10] : memref<1x128xf32, #tpu.memory_space<vmem>>, vector<1x128xf32>
    %11 = vector.broadcast %10 : vector<1x128xf32> to vector<256x128xf32>
    %12 = arith.addf %9, %11 : vector<256x128xf32>
    %c0_11 = arith.constant 0 : index
    %c0_12 = arith.constant 0 : index
    %13 = vector.load %arg6[%c0_11, %c0_12] : memref<256x128xf32, #tpu.memory_space<vmem>>, vector<256x128xf32>
    tpu.vector_store %arg6[%c0_11, %c0_12], %12 {strides = array<i32>} : memref<256x128xf32, #tpu.memory_space<vmem>>, vector<256x128xf32>,
    return
  }
  func.func @transform_0(%arg0: i32) -> (i32, i32) {
    %c0_i32 = arith.constant 0 : i32
    %c0_i32_0 = arith.constant 0 : i32
    return %arg0, %c0_i32 : i32, i32
  }
  func.func @transform_1(%arg0: i32) -> (i32, i32) {
    %c0_i32 = arith.constant 0 : i32
    %c0_i32_0 = arith.constant 0 : i32
    %c0_i32_1 = arith.constant 0 : i32
    return %c0_i32, %c0_i32_0 : i32, i32
  }
  func.func @transform_2(%arg0: i32) -> (i32, i32) {
    %c0_i32 = arith.constant 0 : i32
    %c0_i32_0 = arith.constant 0 : i32
    %c0_i32_1 = arith.constant 0 : i32
    return %c0_i32, %c0_i32_0 : i32, i32
  }
  func.func @transform_3(%arg0: i32) -> (i32, i32) {
    %c0_i32 = arith.constant 0 : i32
    %c0_i32_0 = arith.constant 0 : i32
    %c0_i32_1 = arith.constant 0 : i32
    return %c0_i32, %c0_i32_0 : i32, i32
  }
  func.func @transform_4(%arg0: i32) -> (i32, i32) {
    %c0_i32 = arith.constant 0 : i32
    %c0_i32_0 = arith.constant 0 : i32
    %c0_i32_1 = arith.constant 0 : i32
    return %c0_i32, %c0_i32_0 : i32, i32
  }
  func.func @transform_5(%arg0: i32) -> (i32, i32) {
    %c0_i32 = arith.constant 0 : i32
    %c0_i32_0 = arith.constant 0 : i32
    return %arg0, %c0_i32 : i32, i32
  }
}

</mosaic_0001>

<llo_original>
// kernel: positionwise_ffn.1
$region0: #{positionwise_ffn.1}
  #allocation0 [shape = 'u32[]', space=smem, size = 0x4, offset = 0x4, fixed_abs, tag = 'smem constant byte address 0x4 - core index']
  #allocation1 [shape = 'u32[144,128]{1,0:T(1,128)}', space=vmem, size = 0x12000, scoped, tag = 'internal scratch']
  %s0 = inlined_call_operand.vmem [shape: f32[256,128], index: 0, kind: input, shape index: {}]
  %s1 = inlined_call_operand.vmem [shape: f32[128,256], index: 1, kind: input, shape index: {}]
  %s2 = inlined_call_operand.vmem [shape: f32[1,256], index: 2, kind: input, shape index: {}]
  %s3 = inlined_call_operand.vmem [shape: f32[256,128], index: 3, kind: input, shape index: {}]
  %s4 = inlined_call_operand.vmem [shape: f32[1,128], index: 4, kind: input, shape index: {}]
  %s5 = inlined_call_operand.vmem [shape: f32[256,128], index: 5, kind: output, shape index: {}]
  %s6 = sld [smem:[#allocation0]]
  $region30: #{positionwise_ffn.1} parent=0
    _
  %s8 = ssub.s32 1, %s6
  %s9 = scalar_select 0, %s8, %s6
  // Predicated region
  $region2: #{positionwise_ffn.1} parent=0 // pred_check
    _
  $region3: #{positionwise_ffn.1} parent=0 // pred_check_branch
    %11 = sbr.rel (0) target = $region5
  $region4: #{positionwise_ffn.1} parent=0 // pred_region
    _
  $region5: #{positionwise_ffn.1} parent=0 // pred_fallthru
    _
  // Predicated region
  $region6: #{positionwise_ffn.1} parent=0 // pred_check
    _
  $region7: #{positionwise_ffn.1} parent=0 // pred_check_branch
    %13 = sbr.rel (0) target = $region9
  $region8: #{positionwise_ffn.1} parent=0 // pred_region
    _
  $region9: #{positionwise_ffn.1} parent=0 // pred_fallthru
    _
  // Predicated region
  $region10: #{positionwise_ffn.1} parent=0 // pred_check
    _
  $region11: #{positionwise_ffn.1} parent=0 // pred_check_branch
    %15 = sbr.rel (0) target = $region13
  $region12: #{positionwise_ffn.1} parent=0 // pred_region
    _
  $region13: #{positionwise_ffn.1} parent=0 // pred_fallthru
    _
  // Predicated region
  $region14: #{positionwise_ffn.1} parent=0 // pred_check
    _
  $region15: #{positionwise_ffn.1} parent=0 // pred_check_branch
    %17 = sbr.rel (0) target = $region17
  $region16: #{positionwise_ffn.1} parent=0 // pred_region
    _
  $region17: #{positionwise_ffn.1} parent=0 // pred_fallthru
    _
  // Predicated region
  $region18: #{positionwise_ffn.1} parent=0 // pred_check
    _
  $region19: #{positionwise_ffn.1} parent=0 // pred_check_branch
    %19 = sbr.rel (0) target = $region21
  $region20: #{positionwise_ffn.1} parent=0 // pred_region
    _
  $region21: #{positionwise_ffn.1} parent=0 // pred_fallthru
    _
  %v20 = vld [vmem:[%s0] sm:$0xff]
  %v21 = vld [vmem:[%s0 + $0x8] sm:$0xff]
  %v22 = vld [vmem:[%s0 + $0x10] sm:$0xff]
  %v23 = vld [vmem:[%s0 + $0x18] sm:$0xff]
  %v24 = vld [vmem:[%s0 + $0x20] sm:$0xff]
  %v25 = vld [vmem:[%s0 + $0x28] sm:$0xff]
  %v26 = vld [vmem:[%s0 + $0x30] sm:$0xff]
  %v27 = vld [vmem:[%s0 + $0x38] sm:$0xff]
  %v28 = vld [vmem:[%s0 + $0x40] sm:$0xff]
  %v29 = vld [vmem:[%s0 + $0x48] sm:$0xff]
  %v30 = vld [vmem:[%s0 + $0x50] sm:$0xff]
  %v31 = vld [vmem:[%s0 + $0x58] sm:$0xff]
  %v32 = vld [vmem:[%s0 + $0x60] sm:$0xff]
  %v33 = vld [vmem:[%s0 + $0x68] sm:$0xff]
  %v34 = vld [vmem:[%s0 + $0x70] sm:$0xff]
  %v35 = vld [vmem:[%s0 + $0x78] sm:$0xff]
  %v36 = vld [vmem:[%s0 + $0x80] sm:$0xff]
  %v37 = vld [vmem:[%s0 + $0x88] sm:$0xff]
  %v38 = vld [vmem:[%s0 + $0x90] sm:$0xff]
  %v39 = vld [vmem:[%s0 + $0x98] sm:$0xff]
  %v40 = vld [vmem:[%s0 + $0xa0] sm:$0xff]
  %v41 = vld [vmem:[%s0 + $0xa8] sm:$0xff]
  %v42 = vld [vmem:[%s0 + $0xb0] sm:$0xff]
  %v43 = vld [vmem:[%s0 + $0xb8] sm:$0xff]
  %v44 = vld [vmem:[%s0 + $0xc0] sm:$0xff]
  %v45 = vld [vmem:[%s0 + $0xc8] sm:$0xff]
  %v46 = vld [vmem:[%s0 + $0xd0] sm:$0xff]
  %v47 = vld [vmem:[%s0 + $0xd8] sm:$0xff]
  %v48 = vld [vmem:[%s0 + $0xe0] sm:$0xff]
  %v49 = vld [vmem:[%s0 + $0xe8] sm:$0xff]
  %v50 = vld [vmem:[%s0 + $0xf0] sm:$0xff]
  %v51 = vld [vmem:[%s0 + $0xf8] sm:$0xff]
  %v52 = vld [vmem:[%s1] sm:$0xff]
  %v53 = vld [vmem:[%s1 + $0x8] sm:$0xff]
  %v54 = vld [vmem:[%s1 + $0x10] sm:$0xff]
  %v55 = vld [vmem:[%s1 + $0x18] sm:$0xff]
  %v56 = vld [vmem:[%s1 + $0x20] sm:$0xff]
  %v57 = vld [vmem:[%s1 + $0x28] sm:$0xff]
  %v58 = vld [vmem:[%s1 + $0x30] sm:$0xff]
  %v59 = vld [vmem:[%s1 + $0x38] sm:$0xff]
  %v60 = vld [vmem:[%s1 + $0x40] sm:$0xff]
  %v61 = vld [vmem:[%s1 + $0x48] sm:$0xff]
  %v62 = vld [vmem:[%s1 + $0x50] sm:$0xff]
  %v63 = vld [vmem:[%s1 + $0x58] sm:$0xff]
  %v64 = vld [vmem:[%s1 + $0x60] sm:$0xff]
  %v65 = vld [vmem:[%s1 + $0x68] sm:$0xff]
  %v66 = vld [vmem:[%s1 + $0x70] sm:$0xff]
  %v67 = vld [vmem:[%s1 + $0x78] sm:$0xff]
  %v68 = vld [vmem:[%s1 + $0x80] sm:$0xff]
  %v69 = vld [vmem:[%s1 + $0x88] sm:$0xff]
  %v70 = vld [vmem:[%s1 + $0x90] sm:$0xff]
  %v71 = vld [vmem:[%s1 + $0x98] sm:$0xff]
  %v72 = vld [vmem:[%s1 + $0xa0] sm:$0xff]
  %v73 = vld [vmem:[%s1 + $0xa8] sm:$0xff]
  %v74 = vld [vmem:[%s1 + $0xb0] sm:$0xff]
  %v75 = vld [vmem:[%s1 + $0xb8] sm:$0xff]
  %v76 = vld [vmem:[%s1 + $0xc0] sm:$0xff]
  %v77 = vld [vmem:[%s1 + $0xc8] sm:$0xff]
  %v78 = vld [vmem:[%s1 + $0xd0] sm:$0xff]
  %v79 = vld [vmem:[%s1 + $0xd8] sm:$0xff]
  %v80 = vld [vmem:[%s1 + $0xe0] sm:$0xff]
  %v81 = vld [vmem:[%s1 + $0xe8] sm:$0xff]
  %v82 = vld [vmem:[%s1 + $0xf0] sm:$0xff]
  %v83 = vld [vmem:[%s1 + $0xf8] sm:$0xff]
  %v84 = vld [vmem:[%s2] sm:$0x3]
  %v86 = vlaneseq
  %v87 = vshrl.u32 %v86, 7
  %v88 = vsub.s32 0, %v87
  %v89 = vrot.slane %v84, %v88
  %v90 = vlaneseq
  %v91 = vshrl.u32 %v90, 7
  %v92 = vsub.s32 1, %v91
  %v93 = vrot.slane %v84, %v92
  %96 = vmatprep.subr.mxu0 %v53
  %97 = vmatpush1.msra.mxu0 %v52
  %98 = vmatprep.subr.mxu0 %v55
  %99 = vmatpush1.msra.mxu0 %v54
  %100 = vmatprep.subr.mxu0 %v57
  %101 = vmatpush1.msra.mxu0 %v56
  %102 = vmatprep.subr.mxu0 %v59
  %103 = vmatpush1.msra.mxu0 %v58
  %104 = vmatprep.subr.mxu0 %v61
  %105 = vmatpush1.msra.mxu0 %v60
  %106 = vmatprep.subr.mxu0 %v63
  %107 = vmatpush1.msra.mxu0 %v62
  %108 = vmatprep.subr.mxu0 %v65
  %109 = vmatpush1.msra.mxu0 %v64
  %110 = vmatprep.subr.mxu0 %v67
  %111 = vmatpush1.msra.mxu0 %v66
  %112 = vmatprep.subr.mxu0 %v69
  %113 = vmatpush1.msra.mxu0 %v68
  %114 = vmatprep.subr.mxu0 %v71
  %115 = vmatpush1.msra.mxu0 %v70
  %116 = vmatprep.subr.mxu0 %v73
  %117 = vmatpush1.msra.mxu0 %v72
  %118 = vmatprep.subr.mxu0 %v75
  %119 = vmatpush1.msra.mxu0 %v74
  %120 = vmatprep.subr.mxu0 %v77
  %121 = vmatpush1.msra.mxu0 %v76
  %122 = vmatprep.subr.mxu0 %v79
  %123 = vmatpush1.msra.mxu0 %v78
  %124 = vmatprep.subr.mxu0 %v81
  %125 = vmatpush1.msra.mxu0 %v80
  %126 = vmatprep.subr.mxu0 %v83
  %127 = vmatpush1.msra.mxu0 %v82
  %128 = vmatprep.subr.mxu0 0.0
  %129 = vmatpush1.msra.mxu0 0.0
  %130 = vmatprep.subr.mxu0 0.0
  %131 = vmatpush1.msra.mxu0 0.0
  %132 = vmatprep.subr.mxu0 0.0
  %133 = vmatpush1.msra.mxu0 0.0
  %134 = vmatprep.subr.mxu0 0.0
  %135 = vmatpush1.msra.mxu0 0.0
  %136 = vmatprep.subr.mxu0 0.0
  %137 = vmatpush1.msra.mxu0 0.0
  %138 = vmatprep.subr.mxu0 0.0
  %139 = vmatpush1.msra.mxu0 0.0
  %140 = vmatprep.subr.mxu0 0.0
  %141 = vmatpush1.msra.mxu0 0.0
  %142 = vmatprep.subr.mxu0 0.0
  %143 = vmatpush1.msra.mxu0 0.0
  %144 = vmatprep.subr.mxu0 0.0
  %145 = vmatpush1.msra.mxu0 0.0
  %146 = vmatprep.subr.mxu0 0.0
  %147 = vmatpush1.msra.mxu0 0.0
  %148 = vmatprep.subr.mxu0 0.0
  %149 = vmatpush1.msra.mxu0 0.0
  %150 = vmatprep.subr.mxu0 0.0
  %151 = vmatpush1.msra.mxu0 0.0
  %152 = vmatprep.subr.mxu0 0.0
  %153 = vmatpush1.msra.mxu0 0.0
  %154 = vmatprep.subr.mxu0 0.0
  %155 = vmatpush1.msra.mxu0 0.0
  %156 = vmatprep.subr.mxu0 0.0
  %157 = vmatpush1.msra.mxu0 0.0
  %158 = vmatprep.subr.mxu0 0.0
  %159 = vmatpush1.msra.mxu0 0.0
  %160 = vmatprep.mubr.f32.mxu0 0.0
  %161 = vmatmul.mubr.f32.gmra.mrb[0].mxu0 %v20
  %v162 = vpop.f32.mrb[0].mxu0
  %v163 = vadd.f32 %v89, %v162
  %v164 = vpop.f32.mrb[0].mxu0
  %v165 = vadd.f32 %v93, %v164
  %166 = vmatprep.mubr.f32.mxu0 0.0
  %167 = vmatmul.mubr.f32.gmra.mrb[0].mxu0 %v21
  %v168 = vpop.f32.mrb[0].mxu0
  %v169 = vadd.f32 %v89, %v168
  %v170 = vpop.f32.mrb[0].mxu0
  %v171 = vadd.f32 %v93, %v170
  %172 = vmatprep.mubr.f32.mxu0 0.0
  %173 = vmatmul.mubr.f32.gmra.mrb[0].mxu0 %v22
  %v174 = vpop.f32.mrb[0].mxu0
  %v175 = vadd.f32 %v89, %v174
  %v176 = vpop.f32.mrb[0].mxu0
  %v177 = vadd.f32 %v93, %v176
  %178 = vmatprep.mubr.f32.mxu0 0.0
  %179 = vmatmul.mubr.f32.gmra.mrb[0].mxu0 %v23
  %v180 = vpop.f32.mrb[0].mxu0
  %v181 = vadd.f32 %v89, %v180
  %v182 = vpop.f32.mrb[0].mxu0
  %v183 = vadd.f32 %v93, %v182
  %184 = vmatprep.mubr.f32.mxu0 0.0
  %185 = vmatmul.mubr.f32.gmra.mrb[0].mxu0 %v24
  %v186 = vpop.f32.mrb[0].mxu0
  %v187 = vadd.f32 %v89, %v186
  %v188 = vpop.f32.mrb[0].mxu0
  %v189 = vadd.f32 %v93, %v188
  %190 = vmatprep.mubr.f32.mxu0 0.0
  %191 = vmatmul.mubr.f32.gmra.mrb[0].mxu0 %v25
  %v192 = vpop.f32.mrb[0].mxu0
  %v193 = vadd.f32 %v89, %v192
  %v194 = vpop.f32.mrb[0].mxu0
  %v195 = vadd.f32 %v93, %v194
  %196 = vmatprep.mubr.f32.mxu0 0.0
  %197 = vmatmul.mubr.f32.gmra.mrb[0].mxu0 %v26
  %v198 = vpop.f32.mrb[0].mxu0
  %v199 = vadd.f32 %v89, %v198
  %v200 = vpop.f32.mrb[0].mxu0
  %v201 = vadd.f32 %v93, %v200
  %202 = vmatprep.mubr.f32.mxu0 0.0
  %203 = vmatmul.mubr.f32.gmra.mrb[0].mxu0 %v27
  %v204 = vpop.f32.mrb[0].mxu0
  %v205 = vadd.f32 %v89, %v204
  %v206 = vpop.f32.mrb[0].mxu0
  %v207 = vadd.f32 %v93, %v206
  %208 = vmatprep.mubr.f32.mxu0 0.0
  %209 = vmatmul.mubr.f32.gmra.mrb[0].mxu0 %v28
  %v210 = vpop.f32.mrb[0].mxu0
  %v211 = vadd.f32 %v89, %v210
  %v212 = vpop.f32.mrb[0].mxu0
  %v213 = vadd.f32 %v93, %v212
  %214 = vmatprep.mubr.f32.mxu0 0.0
  %215 = vmatmul.mubr.f32.gmra.mrb[0].mxu0 %v29
  %v216 = vpop.f32.mrb[0].mxu0
  %v217 = vadd.f32 %v89, %v216
  %v218 = vpop.f32.mrb[0].mxu0
  %v219 = vadd.f32 %v93, %v218
  %220 = vmatprep.mubr.f32.mxu0 0.0
  %221 = vmatmul.mubr.f32.gmra.mrb[0].mxu0 %v30
  %v222 = vpop.f32.mrb[0].mxu0
  %v223 = vadd.f32 %v89, %v222
  %v224 = vpop.f32.mrb[0].mxu0
  %v225 = vadd.f32 %v93, %v224
  %226 = vmatprep.mubr.f32.mxu0 0.0
  %227 = vmatmul.mubr.f32.gmra.mrb[0].mxu0 %v31
  %v228 = vpop.f32.mrb[0].mxu0
  %v229 = vadd.f32 %v89, %v228
  %v230 = vpop.f32.mrb[0].mxu0
  %v231 = vadd.f32 %v93, %v230
  %232 = vmatprep.mubr.f32.mxu0 0.0
  %233 = vmatmul.mubr.f32.gmra.mrb[0].mxu0 %v32
  %v234 = vpop.f32.mrb[0].mxu0
  %v235 = vadd.f32 %v89, %v234
  %v236 = vpop.f32.mrb[0].mxu0
  %v237 = vadd.f32 %v93, %v236
  %238 = vmatprep.mubr.f32.mxu0 0.0
  %239 = vmatmul.mubr.f32.gmra.mrb[0].mxu0 %v33
  %v240 = vpop.f32.mrb[0].mxu0
  %v241 = vadd.f32 %v89, %v240
  %v242 = vpop.f32.mrb[0].mxu0
  %v243 = vadd.f32 %v93, %v242
  %244 = vmatprep.mubr.f32.mxu0 0.0
  %245 = vmatmul.mubr.f32.gmra.mrb[0].mxu0 %v34
  %v246 = vpop.f32.mrb[0].mxu0
  %v247 = vadd.f32 %v89, %v246
  %v248 = vpop.f32.mrb[0].mxu0
  %v249 = vadd.f32 %v93, %v248
  %250 = vmatprep.mubr.f32.mxu0 0.0
  %251 = vmatmul.mubr.f32.gmra.mrb[0].mxu0 %v35
  %v252 = vpop.f32.mrb[0].mxu0
  %v253 = vadd.f32 %v89, %v252
  %v254 = vpop.f32.mrb[0].mxu0
  %v255 = vadd.f32 %v93, %v254
  %256 = vmatprep.mubr.f32.mxu0 0.0
  %257 = vmatmul.mubr.f32.gmra.mrb[0].mxu0 %v36
  %v258 = vpop.f32.mrb[0].mxu0
  %v259 = vadd.f32 %v89, %v258
  %v260 = vpop.f32.mrb[0].mxu0
  %v261 = vadd.f32 %v93, %v260
  %262 = vmatprep.mubr.f32.mxu0 0.0
  %263 = vmatmul.mubr.f32.gmra.mrb[0].mxu0 %v37
  %v264 = vpop.f32.mrb[0].mxu0
  %v265 = vadd.f32 %v89, %v264
  %v266 = vpop.f32.mrb[0].mxu0
  %v267 = vadd.f32 %v93, %v266
  %268 = vmatprep.mubr.f32.mxu0 0.0
  %269 = vmatmul.mubr.f32.gmra.mrb[0].mxu0 %v38
  %v270 = vpop.f32.mrb[0].mxu0
  %v271 = vadd.f32 %v89, %v270
  %v272 = vpop.f32.mrb[0].mxu0
  %v273 = vadd.f32 %v93, %v272
  %274 = vmatprep.mubr.f32.mxu0 0.0
  %275 = vmatmul.mubr.f32.gmra.mrb[0].mxu0 %v39
  %v276 = vpop.f32.mrb[0].mxu0
  %v277 = vadd.f32 %v89, %v276
  %v278 = vpop.f32.mrb[0].mxu0
  %v279 = vadd.f32 %v93, %v278
  %280 = vmatprep.mubr.f32.mxu0 0.0
  %281 = vmatmul.mubr.f32.gmra.mrb[0].mxu0 %v40
  %v282 = vpop.f32.mrb[0].mxu0
  %v283 = vadd.f32 %v89, %v282
  %v284 = vpop.f32.mrb[0].mxu0
  %v285 = vadd.f32 %v93, %v284
  %286 = vmatprep.mubr.f32.mxu0 0.0
  %287 = vmatmul.mubr.f32.gmra.mrb[0].mxu0 %v41
  %v288 = vpop.f32.mrb[0].mxu0
  %v289 = vadd.f32 %v89, %v288
  %v290 = vpop.f32.mrb[0].mxu0
  %v291 = vadd.f32 %v93, %v290
  %292 = vmatprep.mubr.f32.mxu0 0.0
  %293 = vmatmul.mubr.f32.gmra.mrb[0].mxu0 %v42
  %v294 = vpop.f32.mrb[0].mxu0
  %v295 = vadd.f32 %v89, %v294
  %v296 = vpop.f32.mrb[0].mxu0
  %v297 = vadd.f32 %v93, %v296
  %298 = vmatprep.mubr.f32.mxu0 0.0
  %299 = vmatmul.mubr.f32.gmra.mrb[0].mxu0 %v43
  %v300 = vpop.f32.mrb[0].mxu0
  %v301 = vadd.f32 %v89, %v300
  %v302 = vpop.f32.mrb[0].mxu0
  %v303 = vadd.f32 %v93, %v302
  %304 = vmatprep.mubr.f32.mxu0 0.0
  %305 = vmatmul.mubr.f32.gmra.mrb[0].mxu0 %v44
  %v306 = vpop.f32.mrb[0].mxu0
  %v307 = vadd.f32 %v89, %v306
  %v308 = vpop.f32.mrb[0].mxu0
  %v309 = vadd.f32 %v93, %v308
  %310 = vmatprep.mubr.f32.mxu0 0.0
  %311 = vmatmul.mubr.f32.gmra.mrb[0].mxu0 %v45
  %v312 = vpop.f32.mrb[0].mxu0
  %v313 = vadd.f32 %v89, %v312
  %v314 = vpop.f32.mrb[0].mxu0
  %v315 = vadd.f32 %v93, %v314
  %316 = vmatprep.mubr.f32.mxu0 0.0
  %317 = vmatmul.mubr.f32.gmra.mrb[0].mxu0 %v46
  %v318 = vpop.f32.mrb[0].mxu0
  %v319 = vadd.f32 %v89, %v318
  %v320 = vpop.f32.mrb[0].mxu0
  %v321 = vadd.f32 %v93, %v320
  %322 = vmatprep.mubr.f32.mxu0 0.0
  %323 = vmatmul.mubr.f32.gmra.mrb[0].mxu0 %v47
  %v324 = vpop.f32.mrb[0].mxu0
  %v325 = vadd.f32 %v89, %v324
  %v326 = vpop.f32.mrb[0].mxu0
  %v327 = vadd.f32 %v93, %v326
  %328 = vmatprep.mubr.f32.mxu0 0.0
  %329 = vmatmul.mubr.f32.gmra.mrb[0].mxu0 %v48
  %v330 = vpop.f32.mrb[0].mxu0
  %v331 = vadd.f32 %v89, %v330
  %v332 = vpop.f32.mrb[0].mxu0
  %v333 = vadd.f32 %v93, %v332
  %334 = vmatprep.mubr.f32.mxu0 0.0
  %335 = vmatmul.mubr.f32.gmra.mrb[0].mxu0 %v49
  %v336 = vpop.f32.mrb[0].mxu0
  %v337 = vadd.f32 %v89, %v336
  %v338 = vpop.f32.mrb[0].mxu0
  %v339 = vadd.f32 %v93, %v338
  %340 = vmatprep.mubr.f32.mxu0 0.0
  %341 = vmatmul.mubr.f32.gmra.mrb[0].mxu0 %v50
  %v342 = vpop.f32.mrb[0].mxu0
  %v343 = vadd.f32 %v89, %v342
  %v344 = vpop.f32.mrb[0].mxu0
  %v345 = vadd.f32 %v93, %v344
  %346 = vmatprep.mubr.f32.mxu0 0.0
  %347 = vmatmul.mubr.f32.gmra.mrb[0].mxu0 %v51
  %v348 = vpop.f32.mrb[0].mxu0
  %v349 = vadd.f32 %v89, %v348
  %v350 = vpop.f32.mrb[0].mxu0
  %v351 = vadd.f32 %v93, %v350
  %352 = vdwg.mxu0
  %v353 = vmax.f32 %v163, 0.0
  %v354 = vmax.f32 %v165, 0.0
  %v355 = vmax.f32 %v169, 0.0
  %v356 = vmax.f32 %v171, 0.0
  %v357 = vmax.f32 %v175, 0.0
  %v358 = vmax.f32 %v177, 0.0
  %v359 = vmax.f32 %v181, 0.0
  %v360 = vmax.f32 %v183, 0.0
  %v361 = vmax.f32 %v187, 0.0
  %v362 = vmax.f32 %v189, 0.0
  %v363 = vmax.f32 %v193, 0.0
  %v364 = vmax.f32 %v195, 0.0
  %v365 = vmax.f32 %v199, 0.0
  %v366 = vmax.f32 %v201, 0.0
  %v367 = vmax.f32 %v205, 0.0
  %v368 = vmax.f32 %v207, 0.0
  %v369 = vmax.f32 %v211, 0.0
  %v370 = vmax.f32 %v213, 0.0
  %v371 = vmax.f32 %v217, 0.0
  %v372 = vmax.f32 %v219, 0.0
  %v373 = vmax.f32 %v223, 0.0
  %v374 = vmax.f32 %v225, 0.0
  %v375 = vmax.f32 %v229, 0.0
  %v376 = vmax.f32 %v231, 0.0
  %v377 = vmax.f32 %v235, 0.0
  %v378 = vmax.f32 %v237, 0.0
  %v379 = vmax.f32 %v241, 0.0
  %v380 = vmax.f32 %v243, 0.0
  %v381 = vmax.f32 %v247, 0.0
  %v382 = vmax.f32 %v249, 0.0
  %v383 = vmax.f32 %v253, 0.0
  %v384 = vmax.f32 %v255, 0.0
  %v385 = vmax.f32 %v259, 0.0
  %v386 = vmax.f32 %v261, 0.0
  %v387 = vmax.f32 %v265, 0.0
  %v388 = vmax.f32 %v267, 0.0
  %v389 = vmax.f32 %v271, 0.0
  %v390 = vmax.f32 %v273, 0.0
  %v391 = vmax.f32 %v277, 0.0
  %v392 = vmax.f32 %v279, 0.0
  %v393 = vmax.f32 %v283, 0.0
  %v394 = vmax.f32 %v285, 0.0
  %v395 = vmax.f32 %v289, 0.0
  %v396 = vmax.f32 %v291, 0.0
  %v397 = vmax.f32 %v295, 0.0
  %v398 = vmax.f32 %v297, 0.0
  %v399 = vmax.f32 %v301, 0.0
  %v400 = vmax.f32 %v303, 0.0
  %v401 = vmax.f32 %v307, 0.0
  %v402 = vmax.f32 %v309, 0.0
  %v403 = vmax.f32 %v313, 0.0
  %v404 = vmax.f32 %v315, 0.0
  %v405 = vmax.f32 %v319, 0.0
  %v406 = vmax.f32 %v321, 0.0
  %v407 = vmax.f32 %v325, 0.0
  %v408 = vmax.f32 %v327, 0.0
  %v409 = vmax.f32 %v331, 0.0
  %v410 = vmax.f32 %v333, 0.0
  %v411 = vmax.f32 %v337, 0.0
  %v412 = vmax.f32 %v339, 0.0
  %v413 = vmax.f32 %v343, 0.0
  %v414 = vmax.f32 %v345, 0.0
  %v415 = vmax.f32 %v349, 0.0
  %v416 = vmax.f32 %v351, 0.0
  %v417 = vld [vmem:[%s3] sm:$0xff]
  %v418 = vld [vmem:[%s3 + $0x8] sm:$0xff]
  %v419 = vld [vmem:[%s3 + $0x10] sm:$0xff]
  %v420 = vld [vmem:[%s3 + $0x18] sm:$0xff]
  %v421 = vld [vmem:[%s3 + $0x20] sm:$0xff]
  %v422 = vld [vmem:[%s3 + $0x28] sm:$0xff]
  %v423 = vld [vmem:[%s3 + $0x30] sm:$0xff]
  %v424 = vld [vmem:[%s3 + $0x38] sm:$0xff]
  %v425 = vld [vmem:[%s3 + $0x40] sm:$0xff]
  %v426 = vld [vmem:[%s3 + $0x48] sm:$0xff]
  %v427 = vld [vmem:[%s3 + $0x50] sm:$0xff]
  %v428 = vld [vmem:[%s3 + $0x58] sm:$0xff]
  %v429 = vld [vmem:[%s3 + $0x60] sm:$0xff]
  %v430 = vld [vmem:[%s3 + $0x68] sm:$0xff]
  %v431 = vld [vmem:[%s3 + $0x70] sm:$0xff]
  %v432 = vld [vmem:[%s3 + $0x78] sm:$0xff]
  %v433 = vld [vmem:[%s3 + $0x80] sm:$0xff]
  %v434 = vld [vmem:[%s3 + $0x88] sm:$0xff]
  %v435 = vld [vmem:[%s3 + $0x90] sm:$0xff]
  %v436 = vld [vmem:[%s3 + $0x98] sm:$0xff]
  %v437 = vld [vmem:[%s3 + $0xa0] sm:$0xff]
  %v438 = vld [vmem:[%s3 + $0xa8] sm:$0xff]
  %v439 = vld [vmem:[%s3 + $0xb0] sm:$0xff]
  %v440 = vld [vmem:[%s3 + $0xb8] sm:$0xff]
  %v441 = vld [vmem:[%s3 + $0xc0] sm:$0xff]
  %v442 = vld [vmem:[%s3 + $0xc8] sm:$0xff]
  %v443 = vld [vmem:[%s3 + $0xd0] sm:$0xff]
  %v444 = vld [vmem:[%s3 + $0xd8] sm:$0xff]
  %v445 = vld [vmem:[%s3 + $0xe0] sm:$0xff]
  %v446 = vld [vmem:[%s3 + $0xe8] sm:$0xff]
  %v447 = vld [vmem:[%s3 + $0xf0] sm:$0xff]
  %v448 = vld [vmem:[%s3 + $0xf8] sm:$0xff]
  %v449 = vld [vmem:[%s4] sm:$0x1]
  %v451 = vlaneseq
  %v452 = vshrl.u32 %v451, 7
  %v453 = vsub.s32 0, %v452
  %v454 = vrot.slane %v449, %v453
  %456 = vmatprep.subr.mxu0 0.0
  %457 = vmatpush1.msra.mxu0 %v417
  %458 = vmatprep.subr.mxu0 0.0
  %459 = vmatpush1.msra.mxu0 %v418
  %460 = vmatprep.subr.mxu0 0.0
  %461 = vmatpush1.msra.mxu0 %v419
  %462 = vmatprep.subr.mxu0 0.0
  %463 = vmatpush1.msra.mxu0 %v420
  %464 = vmatprep.subr.mxu0 0.0
  %465 = vmatpush1.msra.mxu0 %v421
  %466 = vmatprep.subr.mxu0 0.0
  %467 = vmatpush1.msra.mxu0 %v422
  %468 = vmatprep.subr.mxu0 0.0
  %469 = vmatpush1.msra.mxu0 %v423
  %470 = vmatprep.subr.mxu0 0.0
  %471 = vmatpush1.msra.mxu0 %v424
  %472 = vmatprep.subr.mxu0 0.0
  %473 = vmatpush1.msra.mxu0 %v425
  %474 = vmatprep.subr.mxu0 0.0
  %475 = vmatpush1.msra.mxu0 %v426
  %476 = vmatprep.subr.mxu0 0.0
  %477 = vmatpush1.msra.mxu0 %v427
  %478 = vmatprep.subr.mxu0 0.0
  %479 = vmatpush1.msra.mxu0 %v428
  %480 = vmatprep.subr.mxu0 0.0
  %481 = vmatpush1.msra.mxu0 %v429
  %482 = vmatprep.subr.mxu0 0.0
  %483 = vmatpush1.msra.mxu0 %v430
  %484 = vmatprep.subr.mxu0 0.0
  %485 = vmatpush1.msra.mxu0 %v431
  %486 = vmatprep.subr.mxu0 0.0
  %487 = vmatpush1.msra.mxu0 %v432
  %488 = vmatprep.subr.mxu0 0.0
  %489 = vmatpush1.msra.mxu0 %v433
  %490 = vmatprep.subr.mxu0 0.0
  %491 = vmatpush1.msra.mxu0 %v434
  %492 = vmatprep.subr.mxu0 0.0
  %493 = vmatpush1.msra.mxu0 %v435
  %494 = vmatprep.subr.mxu0 0.0
  %495 = vmatpush1.msra.mxu0 %v436
  %496 = vmatprep.subr.mxu0 0.0
  %497 = vmatpush1.msra.mxu0 %v437
  %498 = vmatprep.subr.mxu0 0.0
  %499 = vmatpush1.msra.mxu0 %v438
  %500 = vmatprep.subr.mxu0 0.0
  %501 = vmatpush1.msra.mxu0 %v439
  %502 = vmatprep.subr.mxu0 0.0
  %503 = vmatpush1.msra.mxu0 %v440
  %504 = vmatprep.subr.mxu0 0.0
  %505 = vmatpush1.msra.mxu0 %v441
  %506 = vmatprep.subr.mxu0 0.0
  %507 = vmatpush1.msra.mxu0 %v442
  %508 = vmatprep.subr.mxu0 0.0
  %509 = vmatpush1.msra.mxu0 %v443
  %510 = vmatprep.subr.mxu0 0.0
  %511 = vmatpush1.msra.mxu0 %v444
  %512 = vmatprep.subr.mxu0 0.0
  %513 = vmatpush1.msra.mxu0 %v445
  %514 = vmatprep.subr.mxu0 0.0
  %515 = vmatpush1.msra.mxu0 %v446
  %516 = vmatprep.subr.mxu0 0.0
  %517 = vmatpush1.msra.mxu0 %v447
  %518 = vmatprep.subr.mxu0 0.0
  %519 = vmatpush1.msra.mxu0 %v448
  %520 = vmatprep.mubr.f32.mxu0 %v354
  %521 = vmatmul.mubr.f32.gmra.mrb[0].mxu0 %v353
  %v522 = vpop.f32.mrb[0].mxu0
  %v523 = vadd.f32 %v454, %v522
  %v524 = vpop.f32.mrb[0].mxu0
  %525 = vmatprep.mubr.f32.mxu0 %v356
  %526 = vmatmul.mubr.f32.gmra.mrb[0].mxu0 %v355
  %v527 = vpop.f32.mrb[0].mxu0
  %v528 = vadd.f32 %v454, %v527
  %v529 = vpop.f32.mrb[0].mxu0
  %530 = vmatprep.mubr.f32.mxu0 %v358
  %531 = vmatmul.mubr.f32.gmra.mrb[0].mxu0 %v357
  %v532 = vpop.f32.mrb[0].mxu0
  %v533 = vadd.f32 %v454, %v532
  %v534 = vpop.f32.mrb[0].mxu0
  %535 = vmatprep.mubr.f32.mxu0 %v360
  %536 = vmatmul.mubr.f32.gmra.mrb[0].mxu0 %v359
  %v537 = vpop.f32.mrb[0].mxu0
  %v538 = vadd.f32 %v454, %v537
  %v539 = vpop.f32.mrb[0].mxu0
  %540 = vmatprep.mubr.f32.mxu0 %v362
  %541 = vmatmul.mubr.f32.gmra.mrb[0].mxu0 %v361
  %v542 = vpop.f32.mrb[0].mxu0
  %v543 = vadd.f32 %v454, %v542
  %v544 = vpop.f32.mrb[0].mxu0
  %545 = vmatprep.mubr.f32.mxu0 %v364
  %546 = vmatmul.mubr.f32.gmra.mrb[0].mxu0 %v363
  %v547 = vpop.f32.mrb[0].mxu0
  %v548 = vadd.f32 %v454, %v547
  %v549 = vpop.f32.mrb[0].mxu0
  %550 = vmatprep.mubr.f32.mxu0 %v366
  %551 = vmatmul.mubr.f32.gmra.mrb[0].mxu0 %v365
  %v552 = vpop.f32.mrb[0].mxu0
  %v553 = vadd.f32 %v454, %v552
  %v554 = vpop.f32.mrb[0].mxu0
  %555 = vmatprep.mubr.f32.mxu0 %v368
  %556 = vmatmul.mubr.f32.gmra.mrb[0].mxu0 %v367
  %v557 = vpop.f32.mrb[0].mxu0
  %v558 = vadd.f32 %v454, %v557
  %v559 = vpop.f32.mrb[0].mxu0
  %560 = vmatprep.mubr.f32.mxu0 %v370
  %561 = vmatmul.mubr.f32.gmra.mrb[0].mxu0 %v369
  %v562 = vpop.f32.mrb[0].mxu0
  %v563 = vadd.f32 %v454, %v562
  %v564 = vpop.f32.mrb[0].mxu0
  %565 = vmatprep.mubr.f32.mxu0 %v372
  %566 = vmatmul.mubr.f32.gmra.mrb[0].mxu0 %v371
  %v567 = vpop.f32.mrb[0].mxu0
  %v568 = vadd.f32 %v454, %v567
  %v569 = vpop.f32.mrb[0].mxu0
  %570 = vmatprep.mubr.f32.mxu0 %v374
  %571 = vmatmul.mubr.f32.gmra.mrb[0].mxu0 %v373
  %v572 = vpop.f32.mrb[0].mxu0
  %v573 = vadd.f32 %v454, %v572
  %v574 = vpop.f32.mrb[0].mxu0
  %575 = vmatprep.mubr.f32.mxu0 %v376
  %576 = vmatmul.mubr.f32.gmra.mrb[0].mxu0 %v375
  %v577 = vpop.f32.mrb[0].mxu0
  %v578 = vadd.f32 %v454, %v577
  %v579 = vpop.f32.mrb[0].mxu0
  %580 = vmatprep.mubr.f32.mxu0 %v378
  %581 = vmatmul.mubr.f32.gmra.mrb[0].mxu0 %v377
  %v582 = vpop.f32.mrb[0].mxu0
  %v583 = vadd.f32 %v454, %v582
  %v584 = vpop.f32.mrb[0].mxu0
  %585 = vmatprep.mubr.f32.mxu0 %v380
  %586 = vmatmul.mubr.f32.gmra.mrb[0].mxu0 %v379
  %v587 = vpop.f32.mrb[0].mxu0
  %v588 = vadd.f32 %v454, %v587
  %v589 = vpop.f32.mrb[0].mxu0
  %590 = vmatprep.mubr.f32.mxu0 %v382
  %591 = vmatmul.mubr.f32.gmra.mrb[0].mxu0 %v381
  %v592 = vpop.f32.mrb[0].mxu0
  %v593 = vadd.f32 %v454, %v592
  %v594 = vpop.f32.mrb[0].mxu0
  %595 = vmatprep.mubr.f32.mxu0 %v384
  %596 = vmatmul.mubr.f32.gmra.mrb[0].mxu0 %v383
  %v597 = vpop.f32.mrb[0].mxu0
  %v598 = vadd.f32 %v454, %v597
  %v599 = vpop.f32.mrb[0].mxu0
  %600 = vmatprep.mubr.f32.mxu0 %v386
  %601 = vmatmul.mubr.f32.gmra.mrb[0].mxu0 %v385
  %v602 = vpop.f32.mrb[0].mxu0
  %v603 = vadd.f32 %v454, %v602
  %v604 = vpop.f32.mrb[0].mxu0
  %605 = vmatprep.mubr.f32.mxu0 %v388
  %606 = vmatmul.mubr.f32.gmra.mrb[0].mxu0 %v387
  %v607 = vpop.f32.mrb[0].mxu0
  %v608 = vadd.f32 %v454, %v607
  %v609 = vpop.f32.mrb[0].mxu0
  %610 = vmatprep.mubr.f32.mxu0 %v390
  %611 = vmatmul.mubr.f32.gmra.mrb[0].mxu0 %v389
  %v612 = vpop.f32.mrb[0].mxu0
  %v613 = vadd.f32 %v454, %v612
  %v614 = vpop.f32.mrb[0].mxu0
  %615 = vmatprep.mubr.f32.mxu0 %v392
  %616 = vmatmul.mubr.f32.gmra.mrb[0].mxu0 %v391
  %v617 = vpop.f32.mrb[0].mxu0
  %v618 = vadd.f32 %v454, %v617
  %v619 = vpop.f32.mrb[0].mxu0
  %620 = vmatprep.mubr.f32.mxu0 %v394
  %621 = vmatmul.mubr.f32.gmra.mrb[0].mxu0 %v393
  %v622 = vpop.f32.mrb[0].mxu0
  %v623 = vadd.f32 %v454, %v622
  %v624 = vpop.f32.mrb[0].mxu0
  %625 = vmatprep.mubr.f32.mxu0 %v396
  %626 = vmatmul.mubr.f32.gmra.mrb[0].mxu0 %v395
  %v627 = vpop.f32.mrb[0].mxu0
  %v628 = vadd.f32 %v454, %v627
  %v629 = vpop.f32.mrb[0].mxu0
  %630 = vmatprep.mubr.f32.mxu0 %v398
  %631 = vmatmul.mubr.f32.gmra.mrb[0].mxu0 %v397
  %v632 = vpop.f32.mrb[0].mxu0
  %v633 = vadd.f32 %v454, %v632
  %v634 = vpop.f32.mrb[0].mxu0
  %635 = vmatprep.mubr.f32.mxu0 %v400
  %636 = vmatmul.mubr.f32.gmra.mrb[0].mxu0 %v399
  %v637 = vpop.f32.mrb[0].mxu0
  %v638 = vadd.f32 %v454, %v637
  %v639 = vpop.f32.mrb[0].mxu0
  %640 = vmatprep.mubr.f32.mxu0 %v402
  %641 = vmatmul.mubr.f32.gmra.mrb[0].mxu0 %v401
  %v642 = vpop.f32.mrb[0].mxu0
  %v643 = vadd.f32 %v454, %v642
  %v644 = vpop.f32.mrb[0].mxu0
  %645 = vmatprep.mubr.f32.mxu0 %v404
  %646 = vmatmul.mubr.f32.gmra.mrb[0].mxu0 %v403
  %v647 = vpop.f32.mrb[0].mxu0
  %v648 = vadd.f32 %v454, %v647
  %v649 = vpop.f32.mrb[0].mxu0
  %650 = vmatprep.mubr.f32.mxu0 %v406
  %651 = vmatmul.mubr.f32.gmra.mrb[0].mxu0 %v405
  %v652 = vpop.f32.mrb[0].mxu0
  %v653 = vadd.f32 %v454, %v652
  %v654 = vpop.f32.mrb[0].mxu0
  %655 = vmatprep.mubr.f32.mxu0 %v408
  %656 = vmatmul.mubr.f32.gmra.mrb[0].mxu0 %v407
  %v657 = vpop.f32.mrb[0].mxu0
  %v658 = vadd.f32 %v454, %v657
  %v659 = vpop.f32.mrb[0].mxu0
  %660 = vmatprep.mubr.f32.mxu0 %v410
  %661 = vmatmul.mubr.f32.gmra.mrb[0].mxu0 %v409
  %v662 = vpop.f32.mrb[0].mxu0
  %v663 = vadd.f32 %v454, %v662
  %v664 = vpop.f32.mrb[0].mxu0
  %665 = vmatprep.mubr.f32.mxu0 %v412
  %666 = vmatmul.mubr.f32.gmra.mrb[0].mxu0 %v411
  %v667 = vpop.f32.mrb[0].mxu0
  %v668 = vadd.f32 %v454, %v667
  %v669 = vpop.f32.mrb[0].mxu0
  %670 = vmatprep.mubr.f32.mxu0 %v414
  %671 = vmatmul.mubr.f32.gmra.mrb[0].mxu0 %v413
  %v672 = vpop.f32.mrb[0].mxu0
  %v673 = vadd.f32 %v454, %v672
  %v674 = vpop.f32.mrb[0].mxu0
  %675 = vmatprep.mubr.f32.mxu0 %v416
  %676 = vmatmul.mubr.f32.gmra.mrb[0].mxu0 %v415
  %v677 = vpop.f32.mrb[0].mxu0
  %v678 = vadd.f32 %v454, %v677
  %v679 = vpop.f32.mrb[0].mxu0
  %680 = vdwg.mxu0
  %681 = vst [vmem:[%s5] sm:$0xff] %v523
  %682 = vst [vmem:[%s5 + $0x8] sm:$0xff] %v528
  %683 = vst [vmem:[%s5 + $0x10] sm:$0xff] %v533
  %684 = vst [vmem:[%s5 + $0x18] sm:$0xff] %v538
  %685 = vst [vmem:[%s5 + $0x20] sm:$0xff] %v543
  %686 = vst [vmem:[%s5 + $0x28] sm:$0xff] %v548
  %687 = vst [vmem:[%s5 + $0x30] sm:$0xff] %v553
  %688 = vst [vmem:[%s5 + $0x38] sm:$0xff] %v558
  %689 = vst [vmem:[%s5 + $0x40] sm:$0xff] %v563
  %690 = vst [vmem:[%s5 + $0x48] sm:$0xff] %v568
  %691 = vst [vmem:[%s5 + $0x50] sm:$0xff] %v573
  %692 = vst [vmem:[%s5 + $0x58] sm:$0xff] %v578
  %693 = vst [vmem:[%s5 + $0x60] sm:$0xff] %v583
  %694 = vst [vmem:[%s5 + $0x68] sm:$0xff] %v588
  %695 = vst [vmem:[%s5 + $0x70] sm:$0xff] %v593
  %696 = vst [vmem:[%s5 + $0x78] sm:$0xff] %v598
  %697 = vst [vmem:[%s5 + $0x80] sm:$0xff] %v603
  %698 = vst [vmem:[%s5 + $0x88] sm:$0xff] %v608
  %699 = vst [vmem:[%s5 + $0x90] sm:$0xff] %v613
  %700 = vst [vmem:[%s5 + $0x98] sm:$0xff] %v618
  %701 = vst [vmem:[%s5 + $0xa0] sm:$0xff] %v623
  %702 = vst [vmem:[%s5 + $0xa8] sm:$0xff] %v628
  %703 = vst [vmem:[%s5 + $0xb0] sm:$0xff] %v633
  %704 = vst [vmem:[%s5 + $0xb8] sm:$0xff] %v638
  %705 = vst [vmem:[%s5 + $0xc0] sm:$0xff] %v643
  %706 = vst [vmem:[%s5 + $0xc8] sm:$0xff] %v648
  %707 = vst [vmem:[%s5 + $0xd0] sm:$0xff] %v653
  %708 = vst [vmem:[%s5 + $0xd8] sm:$0xff] %v658
  %709 = vst [vmem:[%s5 + $0xe0] sm:$0xff] %v663
  %710 = vst [vmem:[%s5 + $0xe8] sm:$0xff] %v668
  %711 = vst [vmem:[%s5 + $0xf0] sm:$0xff] %v673
  %712 = vst [vmem:[%s5 + $0xf8] sm:$0xff] %v678
  // Predicated region
  $region22: #{positionwise_ffn.1} parent=0 // pred_check
    _
  $region23: #{positionwise_ffn.1} parent=0 // pred_check_branch
    %714 = sbr.rel (0) target = $region25
  $region24: #{positionwise_ffn.1} parent=0 // pred_region
    _
  $region25: #{positionwise_ffn.1} parent=0 // pred_fallthru
    _
  // Predicated region
  $region26: #{positionwise_ffn.1} parent=0 // pred_check
    _
  $region27: #{positionwise_ffn.1} parent=0 // pred_check_branch
    %716 = sbr.rel (0) target = $region29
  $region28: #{positionwise_ffn.1} parent=0 // pred_region
    _
  $region29: #{positionwise_ffn.1} parent=0 // pred_fallthru
    _

</llo_original>
